<compile_context>
chip_gen: v7x
topology: tpu7x:2x2x1
jax: 0.10.0
libtpu: 0.0.40
codegen_flags: <defaults>
</compile_context>

<pallas_src>
import jax
import jax.numpy as jnp
from jax.experimental import pallas as pl
from jax.experimental.pallas import tpu as pltpu

_TINY = 1e-13  # allennlp tiny_value_of_dtype(float32)


# ---------------------------------------------------------------------------
# Pallas kernel: TB batch elements per grid step.
# ---------------------------------------------------------------------------
def _cross_match_kernel(q_ref, d_ref, m_ref, o_ref):
    q = q_ref[...].astype(jnp.float32)   # [TB, Q, E]
    d = d_ref[...].astype(jnp.float32)   # [TB, D, E]
    m = m_ref[...].astype(jnp.float32)   # [TB, Q, D]

    # L2-normalize along the embedding axis (matches CosineMatrixAttention:
    # x / (||x||_2 + tiny)).
    q_inv = 1.0 / (jnp.sqrt(jnp.sum(q * q, axis=-1, keepdims=True)) + _TINY)
    d_inv = 1.0 / (jnp.sqrt(jnp.sum(d * d, axis=-1, keepdims=True)) + _TINY)
    qn = q * q_inv                       # [TB, Q, E]
    dn = d * d_inv                       # [TB, D, E]

    # Batched cosine matrix on the MXU: contract over E.
    cos = jnp.einsum("bqe,bde->bqd", qn, dn,
                     preferred_element_type=jnp.float32)   # [TB, Q, D]

    # Mask then tanh, dense [TB, Q, D] store (trailing singleton added outside).
    o_ref[...] = jnp.tanh(cos * m).astype(o_ref.dtype)


# ---------------------------------------------------------------------------
# Wrapper: tiling over batch + pallas_call.
# ---------------------------------------------------------------------------
def cross_match_layer(query_embeddings, document_embeddings, query_by_doc_mask,
                      *, block_b=None):
    B, Q, E = query_embeddings.shape
    Bd, D, Ed = document_embeddings.shape
    assert Bd == B and Ed == E
    assert query_by_doc_mask.shape == (B, Q, D)

    q = query_embeddings.astype(jnp.float32)
    d = document_embeddings.astype(jnp.float32)
    m = query_by_doc_mask.astype(jnp.float32)

    if block_b is None:
        # f32 bytes per batch element resident per step (Pallas double-buffers).
        per_b = 4 * (Q * E + D * E + 2 * Q * D)
        budget = 8 * 1024 * 1024      # conservative per-step VMEM budget (fits v7x/v6e/v5e)
        block_b = max(1, min(B, budget // max(per_b, 1)))
        # Keep several grid steps (megacore sharding on v7x; pipelining everywhere).
        block_b = min(block_b, max(1, pl.cdiv(B, 8)))
    tb = int(block_b)
    grid = (pl.cdiv(B, tb),)

    out = pl.pallas_call(
        _cross_match_kernel,
        out_shape=jax.ShapeDtypeStruct((B, Q, D), jnp.float32),
        grid_spec=pltpu.PrefetchScalarGridSpec(
            num_scalar_prefetch=0,
            grid=grid,
            in_specs=[
                pl.BlockSpec((tb, Q, E), lambda b: (b, 0, 0)),   # query embeddings
                pl.BlockSpec((tb, D, E), lambda b: (b, 0, 0)),   # document embeddings
                pl.BlockSpec((tb, Q, D), lambda b: (b, 0, 0)),   # query_by_doc_mask
            ],
            out_specs=pl.BlockSpec((tb, Q, D), lambda b: (b, 0, 0)),
        ),
        compiler_params=pltpu.CompilerParams(
            dimension_semantics=("parallel",)),
    )(q, d, m)

    # torch: cosine_matrix_m.unsqueeze(-1) -> [B, Q, D, 1]
    return out[..., None].astype(query_embeddings.dtype)


# ---------------------------------------------------------------------------
# Pure-JAX reference (mirrors the PyTorch forward) for a correctness check.
# ---------------------------------------------------------------------------
def _reference(query_embeddings, document_embeddings, query_by_doc_mask):
    qn = query_embeddings / (
        jnp.linalg.norm(query_embeddings, axis=-1, keepdims=True) + _TINY)
    dn = document_embeddings / (
        jnp.linalg.norm(document_embeddings, axis=-1, keepdims=True) + _TINY)
    cos = jnp.einsum("bqe,bde->bqd", qn, dn)
    return jnp.tanh(cos * query_by_doc_mask)[..., None]


if __name__ == "__main__":
    B, Q, D, E = 2, 8, 16, 32

    key = jax.random.PRNGKey(0)
    kq, kd = jax.random.split(key)
    q_emb = jax.random.normal(kq, (B, Q, E), jnp.float32)
    d_emb = jax.random.normal(kd, (B, D, E), jnp.float32)

    # Deterministic padding masks -> query_by_doc_mask = outer(q_mask, d_mask).
    q_lens = jnp.array([8, 5])
    d_lens = jnp.array([16, 10])
    query_mask = (jnp.arange(Q)[None, :] < q_lens[:, None]).astype(jnp.float32)
    document_mask = (jnp.arange(D)[None, :] < d_lens[:, None]).astype(jnp.float32)
    query_by_doc_mask = query_mask[:, :, None] * document_mask[:, None, :]

    out = cross_match_layer(q_emb, d_emb, query_by_doc_mask)
    jax.block_until_ready(out)

    ref = _reference(q_emb, d_emb, query_by_doc_mask)

    assert out.shape == (B, Q, D, 1), out.shape
    assert jnp.allclose(out, ref, rtol=1e-4, atol=1e-5), (out, ref)

    print("KERNEL_OK")
</pallas_src>

<mosaic_0001>
module attributes {stable_mosaic.version = 11 : i64} {
  func.func @_cross_match_kernel(%arg0: i32, %arg1: memref<1x8x32xf32, #tpu.memory_space<vmem>>, %arg2: memref<1x16x32xf32, #tpu.memory_space<vmem>>, %arg3: memref<1x8x16xf32, #tpu.memory_space<vmem>>, %arg4: memref<1x8x16xf32, #tpu.memory_space<vmem>>) attributes {dimension_semantics = [#tpu.dimension_semantics<parallel>], iteration_bounds = array<i64: 2>, scalar_prefetch = 0 : i64, scratch_operands = 0 : i64, tpu.core_type = #tpu.core_type<tc>, window_params = [{transform_indices = @transform_0, window_bounds = array<i64: 1, 8, 32>}, {transform_indices = @transform_1, window_bounds = array<i64: 1, 16, 32>}, {transform_indices = @transform_2, window_bounds = array<i64: 1, 8, 16>}, {transform_indices = @transform_3, window_bounds = array<i64: 1, 8, 16>}]} {
    %c0 = arith.constant 0 : index
    %c0_0 = arith.constant 0 : index
    %c0_1 = arith.constant 0 : index
    %0 = vector.load %arg1[%c0, %c0_0, %c0_1] : memref<1x8x32xf32, #tpu.memory_space<vmem>>, vector<1x8x32xf32>
    %c0_2 = arith.constant 0 : index
    %c0_3 = arith.constant 0 : index
    %c0_4 = arith.constant 0 : index
    %1 = vector.load %arg2[%c0_2, %c0_3, %c0_4] : memref<1x16x32xf32, #tpu.memory_space<vmem>>, vector<1x16x32xf32>
    %c0_5 = arith.constant 0 : index
    %c0_6 = arith.constant 0 : index
    %c0_7 = arith.constant 0 : index
    %2 = vector.load %arg3[%c0_5, %c0_6, %c0_7] : memref<1x8x16xf32, #tpu.memory_space<vmem>>, vector<1x8x16xf32>
    %3 = arith.mulf %0, %0 : vector<1x8x32xf32>
    %cst = arith.constant dense<0.000000e+00> : vector<1x8xf32>
    %4 = vector.multi_reduction <add>, %3, %cst [2] : vector<1x8x32xf32> to vector<1x8xf32>
    %5 = vector.shape_cast %4 : vector<1x8xf32> to vector<1x8x1xf32>
    %6 = math.sqrt %5 : vector<1x8x1xf32>
    %cst_8 = arith.constant 9.99999982E-14 : f32
    %7 = vector.broadcast %cst_8 : f32 to vector<1x8x1xf32>
    %8 = arith.addf %6, %7 : vector<1x8x1xf32>
    %cst_9 = arith.constant 1.000000e+00 : f32
    %9 = vector.broadcast %cst_9 : f32 to vector<1x8x1xf32>
    %10 = arith.divf %9, %8 : vector<1x8x1xf32>
    %11 = arith.mulf %1, %1 : vector<1x16x32xf32>
    %cst_10 = arith.constant dense<0.000000e+00> : vector<1x16xf32>
    %12 = vector.multi_reduction <add>, %11, %cst_10 [2] : vector<1x16x32xf32> to vector<1x16xf32>
    %13 = vector.shape_cast %12 : vector<1x16xf32> to vector<1x16x1xf32>
    %14 = math.sqrt %13 : vector<1x16x1xf32>
    %cst_11 = arith.constant 9.99999982E-14 : f32
    %15 = vector.broadcast %cst_11 : f32 to vector<1x16x1xf32>
    %16 = arith.addf %14, %15 : vector<1x16x1xf32>
    %cst_12 = arith.constant 1.000000e+00 : f32
    %17 = vector.broadcast %cst_12 : f32 to vector<1x16x1xf32>
    %18 = arith.divf %17, %16 : vector<1x16x1xf32>
    %19 = vector.broadcast %10 : vector<1x8x1xf32> to vector<1x8x32xf32>
    %20 = arith.mulf %0, %19 : vector<1x8x32xf32>
    %21 = vector.broadcast %18 : vector<1x16x1xf32> to vector<1x16x32xf32>
    %22 = arith.mulf %1, %21 : vector<1x16x32xf32>
    "tpu.trace_start"() <{level = 10 : i32, message = "bqe,bde->bqd"}> : () -> ()
    %cst_13 = arith.constant dense<0.000000e+00> : vector<1x8x16xf32>
    %23 = tpu.matmul %20, %22, %cst_13 {dimension_numbers = #tpu.dot_dimension_numbers<[2], [2], [1], [1], [0, 0, 0, 1, 1, 1], [0], [0]>} : vector<1x8x32xf32>, vector<1x16x32xf32>, vector<1x8x16xf32> -> vector<1x8x16xf32>
    "tpu.trace_stop"() : () -> ()
    %24 = arith.mulf %23, %2 : vector<1x8x16xf32>
    %25 = math.tanh %24 : vector<1x8x16xf32>
    %c0_14 = arith.constant 0 : index
    %c0_15 = arith.constant 0 : index
    %c0_16 = arith.constant 0 : index
    %26 = vector.load %arg4[%c0_14, %c0_15, %c0_16] : memref<1x8x16xf32, #tpu.memory_space<vmem>>, vector<1x8x16xf32>
    tpu.vector_store %arg4[%c0_14, %c0_15, %c0_16], %25 {strides = array<i32>} : memref<1x8x16xf32, #tpu.memory_space<vmem>>, vector<1x8x16xf32>,
    return
  }
  func.func @transform_0(%arg0: i32) -> (i32, i32, i32) {
    %c0_i32 = arith.constant 0 : i32
    %c0_i32_0 = arith.constant 0 : i32
    %c0_i32_1 = arith.constant 0 : i32
    return %arg0, %c0_i32, %c0_i32_0 : i32, i32, i32
  }
  func.func @transform_1(%arg0: i32) -> (i32, i32, i32) {
    %c0_i32 = arith.constant 0 : i32
    %c0_i32_0 = arith.constant 0 : i32
    %c0_i32_1 = arith.constant 0 : i32
    return %arg0, %c0_i32, %c0_i32_0 : i32, i32, i32
  }
  func.func @transform_2(%arg0: i32) -> (i32, i32, i32) {
    %c0_i32 = arith.constant 0 : i32
    %c0_i32_0 = arith.constant 0 : i32
    %c0_i32_1 = arith.constant 0 : i32
    return %arg0, %c0_i32, %c0_i32_0 : i32, i32, i32
  }
  func.func @transform_3(%arg0: i32) -> (i32, i32, i32) {
    %c0_i32 = arith.constant 0 : i32
    %c0_i32_0 = arith.constant 0 : i32
    %c0_i32_1 = arith.constant 0 : i32
    return %arg0, %c0_i32, %c0_i32_0 : i32, i32, i32
  }
}

</mosaic_0001>

<llo_original>
// kernel: tpu_custom_call.1
$region0: #{tpu_custom_call.1}
  #allocation0 [shape = 'u32[]', space=smem, size = 0x4, offset = 0x4, fixed_abs, tag = 'smem constant byte address 0x4 - core index']
  #allocation1 [shape = 'u32[144,128]{1,0:T(1,128)}', space=vmem, size = 0x12000, scoped, tag = 'internal scratch']
  %s0 = inlined_call_operand.hbm [shape: f32[2,8,32], index: 0, kind: input, shape index: {}]
  %s1 = inlined_call_operand.hbm [shape: f32[2,16,32], index: 1, kind: input, shape index: {}]
  %s2 = inlined_call_operand.hbm [shape: f32[2,8,16], index: 2, kind: input, shape index: {}]
  %s3 = inlined_call_operand.hbm [shape: f32[2,8,16], index: 3, kind: output, shape index: {}]
  %s4 = sld [smem:[#allocation0]]
  $region57: #{tpu_custom_call.1} parent=0
    _
  %s6 = ssub.s32 1, %s4
  %s7 = scalar_select 0, %s6, %s4
  $region1: #{tpu_custom_call.1} parent=0
    #allocation2 [shape = 'u8[8192]{0}', space=vmem, size = 0x2000, scoped, tag = 'input window, operand 0']
    #allocation3 [shape = 's32[2]{0}', space=sflag, size = 0x8, scoped, tag = 'scoped memory for tpu_custom_call.1']
    #allocation4 [shape = 's32[2]{0}', space=sflag, size = 0x8, scoped, tag = 'scoped memory for tpu_custom_call.1']
    #allocation5 [shape = 'u8[16384]{0}', space=vmem, size = 0x4000, scoped, tag = 'input window, operand 1']
    #allocation6 [shape = 's32[2]{0}', space=sflag, size = 0x8, scoped, tag = 'scoped memory for tpu_custom_call.1']
    #allocation7 [shape = 'u8[8192]{0}', space=vmem, size = 0x2000, scoped, tag = 'input window, operand 2']
    #allocation8 [shape = 'u8[8192]{0}', space=vmem, size = 0x2000, scoped, tag = 'output window, operand 0']
    %8 = vsyncpa [#allocation3], 0
    %s9 = scalar_lea.sflag [#allocation3], 1
    %10 = vsyncpa %s9, 0
    %11 = vsyncpa [#allocation6], 0
    %s12 = scalar_lea.sflag [#allocation6], 1
    %13 = vsyncpa %s12, 0
    %14 = vsyncpa [#allocation4], 0
    %s15 = scalar_lea.sflag [#allocation4], 1
    %16 = vsyncpa %s15, 0
    loop: start=0, step=1, limit=4
    $region2: #{tpu_custom_call.1} parent=1 // loop_pre_header
      _
    $region3: #{tpu_custom_call.1} parent=1 // loop_header
      %s18 = sphi 0, %s22
      %p19 = scmp.ge.s32.totalorder %s18, 4
      %s28 = sphi 0, %s30
      %s31 = sphi 0, %s28
      %s32 = sphi 0, %s31
      %s48 = sphi 0, %s32
      %s54 = sphi 0, %s56
      %s57 = sphi 0, %s54
      %s58 = sphi 0, %s57
      %s74 = sphi 0, %s58
      %s80 = sphi 0, %s82
      %s83 = sphi 0, %s80
      %s84 = sphi 0, %s83
      %s100 = sphi 0, %s84
      %s106 = sphi 0, %s108
      %s109 = sphi 0, %s106
      %s110 = sphi 0, %s109
      %s126 = sphi 0, %s110
    $region4: #{tpu_custom_call.1} parent=1 // loop_header_branch
      %21 = sbr.rel (%p19) target = $region8
    $region5: #{tpu_custom_call.1} parent=1 // loop_body
      %s23 = ssub.s32 %s18, 1
      %s24 = ssub.s32 %s18, 2
      %s25 = sadd.s32 %s18, 1
      %s26 = ssub.s32 %s18, %s25
      %p27 = scmp.eq.s32.totalorder %s26, 0
      %s29 = sadd.s32 %s28, 1
      %s30 = scalar_select %p27, %s28, %s29
      %p33 = pneg %p27
      %p34 = scmp.eq.s32.totalorder %s18, 1
      %p35 = por %p33, %p34
      %p36 = scmp.ne.s32.totalorder %s28, %s31
      %p37 = scmp.eq.s32.totalorder %s18, 0
      %p38 = por %p36, %p37
      %p39 = scmp.ne.s32.totalorder %s28, %s31
      %p40 = scmp.eq.s32.totalorder %s23, 1
      %p41 = por %p39, %p40
      %p42 = scmp.ne.s32.totalorder %s31, %s32
      %p43 = scmp.eq.s32.totalorder %s23, 0
      %p44 = por %p42, %p43
      %p45 = scmp.ne.s32.totalorder %s31, %s32
      %p46 = scmp.eq.s32.totalorder %s24, 1
      %p47 = por %p45, %p46
      %p49 = scmp.ne.s32.totalorder %s32, %s48
      %p50 = scmp.eq.s32.totalorder %s24, 0
      %p51 = por %p49, %p50
      %s52 = ssub.s32 %s18, %s25
      %p53 = scmp.eq.s32.totalorder %s52, 0
      %s55 = sadd.s32 %s54, 1
      %s56 = scalar_select %p53, %s54, %s55
      %p59 = pneg %p53
      %p60 = scmp.eq.s32.totalorder %s18, 1
      %p61 = por %p59, %p60
      %p62 = scmp.ne.s32.totalorder %s54, %s57
      %p63 = scmp.eq.s32.totalorder %s18, 0
      %p64 = por %p62, %p63
      %p65 = scmp.ne.s32.totalorder %s54, %s57
      %p66 = scmp.eq.s32.totalorder %s23, 1
      %p67 = por %p65, %p66
      %p68 = scmp.ne.s32.totalorder %s57, %s58
      %p69 = scmp.eq.s32.totalorder %s23, 0
      %p70 = por %p68, %p69
      %p71 = scmp.ne.s32.totalorder %s57, %s58
      %p72 = scmp.eq.s32.totalorder %s24, 1
      %p73 = por %p71, %p72
      %p75 = scmp.ne.s32.totalorder %s58, %s74
      %p76 = scmp.eq.s32.totalorder %s24, 0
      %p77 = por %p75, %p76
      %s78 = ssub.s32 %s18, %s25
      %p79 = scmp.eq.s32.totalorder %s78, 0
      %s81 = sadd.s32 %s80, 1
      %s82 = scalar_select %p79, %s80, %s81
      %p85 = pneg %p79
      %p86 = scmp.eq.s32.totalorder %s18, 1
      %p87 = por %p85, %p86
      %p88 = scmp.ne.s32.totalorder %s80, %s83
      %p89 = scmp.eq.s32.totalorder %s18, 0
      %p90 = por %p88, %p89
      %p91 = scmp.ne.s32.totalorder %s80, %s83
      %p92 = scmp.eq.s32.totalorder %s23, 1
      %p93 = por %p91, %p92
      %p94 = scmp.ne.s32.totalorder %s83, %s84
      %p95 = scmp.eq.s32.totalorder %s23, 0
      %p96 = por %p94, %p95
      %p97 = scmp.ne.s32.totalorder %s83, %s84
      %p98 = scmp.eq.s32.totalorder %s24, 1
      %p99 = por %p97, %p98
      %p101 = scmp.ne.s32.totalorder %s84, %s100
      %p102 = scmp.eq.s32.totalorder %s24, 0
      %p103 = por %p101, %p102
      %s104 = ssub.s32 %s18, %s25
      %p105 = scmp.eq.s32.totalorder %s104, 0
      %s107 = sadd.s32 %s106, 1
      %s108 = scalar_select %p105, %s106, %s107
      %p111 = pneg %p105
      %p112 = scmp.eq.s32.totalorder %s18, 1
      %p113 = por %p111, %p112
      %p114 = scmp.ne.s32.totalorder %s106, %s109
      %p115 = scmp.eq.s32.totalorder %s18, 0
      %p116 = por %p114, %p115
      %p117 = scmp.ne.s32.totalorder %s106, %s109
      %p118 = scmp.eq.s32.totalorder %s23, 1
      %p119 = por %p117, %p118
      %p120 = scmp.ne.s32.totalorder %s109, %s110
      %p121 = scmp.eq.s32.totalorder %s23, 0
      %p122 = por %p120, %p121
      %p123 = scmp.ne.s32.totalorder %s109, %s110
      %p124 = scmp.eq.s32.totalorder %s24, 1
      %p125 = por %p123, %p124
      %p127 = scmp.ne.s32.totalorder %s110, %s126
      %p128 = scmp.eq.s32.totalorder %s24, 0
      %p129 = por %p127, %p128
      %p130 = scmp.le.s32.totalorder 1, %s18
      %p131 = scmp.lt.s32.totalorder %s18, 3
      %p132 = pnand %p130, %p131
      %p133 = pneg %p132
      // Predicated region
      $region9: #{tpu_custom_call.1} parent=5 // pred_check
        _
      $region10: #{tpu_custom_call.1} parent=5 // pred_check_branch
        %135 = sbr.rel (%p132) target = $region12
      $region11: #{tpu_custom_call.1} parent=5 // pred_region
        %s136 = ssub.s32 %s18, 1
      $region12: #{tpu_custom_call.1} parent=5 // pred_fallthru
        _
      %p137 = scmp.lt.s32.totalorder %s18, 2
      // Predicated region
      $region13: #{tpu_custom_call.1} parent=5 // pred_check
        %p138 = pneg %p137
      $region14: #{tpu_custom_call.1} parent=5 // pred_check_branch
        %140 = sbr.rel (%p138) target = $region16
      $region15: #{tpu_custom_call.1} parent=5 // pred_region
        // Predicated region
        $region17: #{tpu_custom_call.1} parent=15 // pred_check
          %p141 = pneg %p38
        $region18: #{tpu_custom_call.1} parent=15 // pred_check_branch
          %143 = sbr.rel (%p141) target = $region20
        $region19: #{tpu_custom_call.1} parent=15 // pred_region
          %s144 = sand.u32 %s28, 1
          %s145 = scalar_lea.sflag [#allocation3], %s144
          %s146 = sand.u32 %s28, 1
          %s147 = smul.addr %s146, 8
          %s148 = scalar_lea.vmem [#allocation2], %s147
          %s150 = ssub.s32 128, 128
          %151 = vsyncadd %s145, %s150
          %s152 = smul.addr %s18, 128
          %s153 = scalar_lea.hbm %s0, %s152
          %s155 = sshll.u32 %s148, 4
          %s156 = int_to_ptr.vmem [resolvable:$true] %s155
          %158 = dma.hbm_to_vmem [thread:$0]  %s153, 128, %s156, %s145
        $region20: #{tpu_custom_call.1} parent=15 // pred_fallthru
          _
        // Predicated region
        $region21: #{tpu_custom_call.1} parent=15 // pred_check
          %p159 = pneg %p64
        $region22: #{tpu_custom_call.1} parent=15 // pred_check_branch
          %161 = sbr.rel (%p159) target = $region24
        $region23: #{tpu_custom_call.1} parent=15 // pred_region
          %s162 = sand.u32 %s18, 1
          %s163 = scalar_lea.sflag [#allocation6], %s162
          %s164 = sand.u32 %s54, 1
          %s165 = smul.addr %s164, 16
          %s166 = scalar_lea.vmem [#allocation5], %s165
          %s168 = ssub.s32 256, 256
          %169 = vsyncadd %s163, %s168
          %s170 = smul.addr %s18, 2
          %s171 = smul.addr %s170, 128
          %s172 = scalar_lea.hbm %s1, %s171
          %s173 = sshll.u32 %s166, 4
          %s174 = int_to_ptr.vmem [resolvable:$true] %s173
          %179 = dma.hbm_to_vmem [thread:$0]  %s172, 256, %s174, %s163, 128, 128, 8
        $region24: #{tpu_custom_call.1} parent=15 // pred_fallthru
          _
        // Predicated region
        $region25: #{tpu_custom_call.1} parent=15 // pred_check
          %p180 = pneg %p90
        $region26: #{tpu_custom_call.1} parent=15 // pred_check_branch
          %182 = sbr.rel (%p180) target = $region28
        $region27: #{tpu_custom_call.1} parent=15 // pred_region
          %s183 = sand.u32 %s18, 1
          %s184 = scalar_lea.sflag [#allocation6], %s183
          %s185 = sand.u32 %s80, 1
          %s186 = smul.addr %s185, 8
          %s187 = scalar_lea.vmem [#allocation7], %s186
          %s189 = ssub.s32 128, 128
          %190 = vsyncadd %s184, %s189
          %s191 = smul.addr %s18, 128
          %s192 = scalar_lea.hbm %s2, %s191
          %s194 = sshll.u32 %s187, 4
          %s195 = int_to_ptr.vmem [resolvable:$true] %s194
          %197 = dma.hbm_to_vmem [thread:$0]  %s192, 128, %s195, %s184
        $region28: #{tpu_custom_call.1} parent=15 // pred_fallthru
          _
      $region16: #{tpu_custom_call.1} parent=5 // pred_fallthru
        _
      %p198 = scmp.le.s32.totalorder 1, %s18
      %p199 = scmp.lt.s32.totalorder %s18, 3
      %p200 = pnand %p198, %p199
      %p201 = pneg %p200
      // Predicated region
      $region29: #{tpu_custom_call.1} parent=5 // pred_check
        _
      $region30: #{tpu_custom_call.1} parent=5 // pred_check_branch
        %203 = sbr.rel (%p200) target = $region32
      $region31: #{tpu_custom_call.1} parent=5 // pred_region
        %s204 = ssub.s32 %s18, 1
        %s205 = sand.u32 %s31, 1
        %s206 = scalar_lea.sflag [#allocation3], %s205
        %s207 = sand.u32 %s31, 1
        %s208 = smul.addr %s207, 8
        %s209 = scalar_lea.vmem [#allocation2], %s208
        // Predicated region
        $region33: #{tpu_custom_call.1} parent=31 // pred_check
          %p210 = pneg %p44
        $region34: #{tpu_custom_call.1} parent=31 // pred_check_branch
          %212 = sbr.rel (%p210) target = $region36
        $region35: #{tpu_custom_call.1} parent=31 // pred_region
          %213 = dma.done %s206, 128
        $region36: #{tpu_custom_call.1} parent=31 // pred_fallthru
          _
        %s214 = sand.u32 %s23, 1
        %s215 = scalar_lea.sflag [#allocation6], %s214
        %s216 = sand.u32 %s57, 1
        %s217 = smul.addr %s216, 16
        %s218 = scalar_lea.vmem [#allocation5], %s217
        // Predicated region
        $region37: #{tpu_custom_call.1} parent=31 // pred_check
          %p219 = pneg %p70
        $region38: #{tpu_custom_call.1} parent=31 // pred_check_branch
          %221 = sbr.rel (%p219) target = $region40
        $region39: #{tpu_custom_call.1} parent=31 // pred_region
          %222 = dma.done %s215, 256
        $region40: #{tpu_custom_call.1} parent=31 // pred_fallthru
          _
        %s223 = sand.u32 %s23, 1
        %s224 = scalar_lea.sflag [#allocation6], %s223
        %s225 = sand.u32 %s83, 1
        %s226 = smul.addr %s225, 8
        %s227 = scalar_lea.vmem [#allocation7], %s226
        // Predicated region
        $region41: #{tpu_custom_call.1} parent=31 // pred_check
          %p228 = pneg %p96
        $region42: #{tpu_custom_call.1} parent=31 // pred_check_branch
          %230 = sbr.rel (%p228) target = $region44
        $region43: #{tpu_custom_call.1} parent=31 // pred_region
          %231 = dma.done %s224, 128
        $region44: #{tpu_custom_call.1} parent=31 // pred_fallthru
          _
        %s232 = sand.u32 %s31, 1
        %s233 = scalar_lea.sflag [#allocation3], %s232
        %s234 = sand.u32 %s31, 1
        %s235 = smul.addr %s234, 8
        %s236 = scalar_lea.vmem [#allocation2], %s235
        %p237 = pneg %p44
        %p238 = pneg %p41
        %s239 = sand.u32 %s23, 1
        %s240 = scalar_lea.sflag [#allocation6], %s239
        %s241 = sand.u32 %s57, 1
        %s242 = smul.addr %s241, 16
        %s243 = scalar_lea.vmem [#allocation5], %s242
        %p244 = pneg %p70
        %p245 = pneg %p67
        %s246 = sand.u32 %s23, 1
        %s247 = scalar_lea.sflag [#allocation6], %s246
        %s248 = sand.u32 %s83, 1
        %s249 = smul.addr %s248, 8
        %s250 = scalar_lea.vmem [#allocation7], %s249
        %p251 = pneg %p96
        %p252 = pneg %p93
        %p253 = pneg %p122
        %p254 = pneg %p119
        %s255 = sand.u32 %s109, 1
        %s256 = scalar_lea.sflag [#allocation4], %s255
        %s257 = sand.u32 %s109, 1
        %s258 = smul.addr %s257, 8
        %s259 = scalar_lea.vmem [#allocation8], %s258
        %v260 = vld [vmem:[%s209] sm:$0xff]
        %v261 = vld [vmem:[%s218] sm:$0xff]
        %v262 = vld [vmem:[%s218 + $0x8] sm:$0xff]
        %v263 = vld [vmem:[%s227] sm:$0xff]
        %v264 = vmul.f32 %v260, %v260
        %vm265 = vcmask 261120
        %v266 = vsel %vm265, %v264, 0.0
        %267 = vadd.xlane.f32.xlu0 %v266
        %v268 = vpop.xlane.xlu0 %267
        %v269 = vrsqrt.pop %v268
        %v270 = vmul.f32 %v268, %v269
        %vm271 = vcmp.eq.f32.partialorder %v268, inf
        %v272 = vsel %vm271, %v268, %v270
        %vm273 = vcmp.eq.f32.partialorder %v268, 0.0
        %v274 = vand.u32 %v268, 2147483648
        %v275 = vsel %vm273, %v274, %v272
        %v276 = vadd.f32 %v275, 1e-13
        %v277 = vrcp.pop %v276
        %v278 = vmul.f32 1.0, %v277
        %v279 = vmul.f32 %v261, %v261
        %v280 = vmul.f32 %v262, %v262
        %v281 = vsel %vm265, %v279, 0.0
        %282 = vadd.xlane.f32.xlu0 %v281
        %v283 = vpop.xlane.xlu0 %282
        %v284 = vsel %vm265, %v280, 0.0
        %285 = vadd.xlane.f32.xlu0 %v284
        %v286 = vpop.xlane.xlu0 %285
        %v287 = vrsqrt.pop %v283
        %v288 = vmul.f32 %v283, %v287
        %vm289 = vcmp.eq.f32.partialorder %v283, inf
        %v290 = vsel %vm289, %v283, %v288
        %vm291 = vcmp.eq.f32.partialorder %v283, 0.0
        %v292 = vand.u32 %v283, 2147483648
        %v293 = vsel %vm291, %v292, %v290
        %v294 = vrsqrt.pop %v286
        %v295 = vmul.f32 %v286, %v294
        %vm296 = vcmp.eq.f32.partialorder %v286, inf
        %v297 = vsel %vm296, %v286, %v295
        %vm298 = vcmp.eq.f32.partialorder %v286, 0.0
        %v299 = vand.u32 %v286, 2147483648
        %v300 = vsel %vm298, %v299, %v297
        %v301 = vadd.f32 %v293, 1e-13
        %v302 = vadd.f32 %v300, 1e-13
        %v303 = vrcp.pop %v301
        %v304 = vmul.f32 1.0, %v303
        %v305 = vrcp.pop %v302
        %v306 = vmul.f32 1.0, %v305
        %v307 = vmul.f32 %v260, %v278
        %v308 = vmul.f32 %v261, %v304
        %v309 = vmul.f32 %v262, %v306
        %v311 = vsel %vm265, %v307, 0
        %v314 = vsel %vm265, %v308, 0
        %v317 = vsel %vm265, %v309, 0
        %319 = vmatprep.subr.mxu0 0.0
        %320 = vmatpush1.xpose.msra.mxu0 %v314
        %321 = vmatprep.subr.mxu0 0.0
        %322 = vmatpush1.xpose.msra.mxu0 %v317
        %323 = vmatprep.subr.mxu0 0.0
        %324 = vmatpush1.xpose.msra.mxu0 0.0
        %325 = vmatprep.subr.mxu0 0.0
        %326 = vmatpush1.xpose.msra.mxu0 0.0
        %327 = vmatprep.subr.mxu0 0.0
        %328 = vmatpush1.xpose.msra.mxu0 0.0
        %329 = vmatprep.subr.mxu0 0.0
        %330 = vmatpush1.xpose.msra.mxu0 0.0
        %331 = vmatprep.subr.mxu0 0.0
        %332 = vmatpush1.xpose.msra.mxu0 0.0
        %333 = vmatprep.subr.mxu0 0.0
        %334 = vmatpush1.xpose.msra.mxu0 0.0
        %335 = vmatprep.subr.mxu0 0.0
        %336 = vmatpush1.xpose.msra.mxu0 0.0
        %337 = vmatprep.subr.mxu0 0.0
        %338 = vmatpush1.xpose.msra.mxu0 0.0
        %339 = vmatprep.subr.mxu0 0.0
        %340 = vmatpush1.xpose.msra.mxu0 0.0
        %341 = vmatprep.subr.mxu0 0.0
        %342 = vmatpush1.xpose.msra.mxu0 0.0
        %343 = vmatprep.subr.mxu0 0.0
        %344 = vmatpush1.xpose.msra.mxu0 0.0
        %345 = vmatprep.subr.mxu0 0.0
        %346 = vmatpush1.xpose.msra.mxu0 0.0
        %347 = vmatprep.subr.mxu0 0.0
        %348 = vmatpush1.xpose.msra.mxu0 0.0
        %349 = vmatprep.subr.mxu0 0.0
        %350 = vmatpush1.xpose.msra.mxu0 0.0
        %351 = vmatprep.subr.mxu0 0.0
        %352 = vmatpush1.xpose.msra.mxu0 0.0
        %353 = vmatprep.subr.mxu0 0.0
        %354 = vmatpush1.xpose.msra.mxu0 0.0
        %355 = vmatprep.subr.mxu0 0.0
        %356 = vmatpush1.xpose.msra.mxu0 0.0
        %357 = vmatprep.subr.mxu0 0.0
        %358 = vmatpush1.xpose.msra.mxu0 0.0
        %359 = vmatprep.subr.mxu0 0.0
        %360 = vmatpush1.xpose.msra.mxu0 0.0
        %361 = vmatprep.subr.mxu0 0.0
        %362 = vmatpush1.xpose.msra.mxu0 0.0
        %363 = vmatprep.subr.mxu0 0.0
        %364 = vmatpush1.xpose.msra.mxu0 0.0
        %365 = vmatprep.subr.mxu0 0.0
        %366 = vmatpush1.xpose.msra.mxu0 0.0
        %367 = vmatprep.subr.mxu0 0.0
        %368 = vmatpush1.xpose.msra.mxu0 0.0
        %369 = vmatprep.subr.mxu0 0.0
        %370 = vmatpush1.xpose.msra.mxu0 0.0
        %371 = vmatprep.subr.mxu0 0.0
        %372 = vmatpush1.xpose.msra.mxu0 0.0
        %373 = vmatprep.subr.mxu0 0.0
        %374 = vmatpush1.xpose.msra.mxu0 0.0
        %375 = vmatprep.subr.mxu0 0.0
        %376 = vmatpush1.xpose.msra.mxu0 0.0
        %377 = vmatprep.subr.mxu0 0.0
        %378 = vmatpush1.xpose.msra.mxu0 0.0
        %379 = vmatprep.subr.mxu0 0.0
        %380 = vmatpush1.xpose.msra.mxu0 0.0
        %381 = vmatprep.subr.mxu0 0.0
        %382 = vmatpush1.xpose.msra.mxu0 0.0
        %383 = vmatprep.mubr.f32.mxu0 0.0
        %384 = vmatmul.mubr.f32.gmra.mrb[0].mxu0 %v311
        %v385 = vpop.f32.mrb[0].mxu0
        %v386 = vadd.f32 0.0, %v385
        %v387 = vpop.f32.mrb[0].mxu0
        %388 = vdwg.mxu0
        %v389 = vmul.f32 %v386, %v263
        %v390 = vtanh.pop %v389
        %vm391 = vcmask 130048
        %392 = vst.msk [vmem:[%s259] sm:$0xff] %vm391, %v390
        %s393 = sand.u32 %s109, 1
        %s394 = scalar_lea.sflag [#allocation4], %s393
        %s395 = sand.u32 %s109, 1
        %s396 = smul.addr %s395, 8
        %s397 = scalar_lea.vmem [#allocation8], %s396
        // Predicated region
        $region45: #{tpu_custom_call.1} parent=31 // pred_check
          %p398 = pneg %p119
        $region46: #{tpu_custom_call.1} parent=31 // pred_check_branch
          %400 = sbr.rel (%p398) target = $region48
        $region47: #{tpu_custom_call.1} parent=31 // pred_region
          %s402 = ssub.s32 128, 128
          %403 = vsyncadd %s394, %s402
          %s404 = smul.addr %s23, 128
          %s405 = scalar_lea.hbm %s3, %s404
          %s407 = sshll.u32 %s397, 4
          %s408 = int_to_ptr.vmem [resolvable:$true] %s407
          %410 = dma.vmem_to_hbm [thread:$0]  %s408, 128, %s405, %s394
        $region48: #{tpu_custom_call.1} parent=31 // pred_fallthru
          _
      $region32: #{tpu_custom_call.1} parent=5 // pred_fallthru
        _
      %p411 = scmp.le.s32.totalorder 2, %s18
      // Predicated region
      $region49: #{tpu_custom_call.1} parent=5 // pred_check
        %p412 = pneg %p411
      $region50: #{tpu_custom_call.1} parent=5 // pred_check_branch
        %414 = sbr.rel (%p412) target = $region52
      $region51: #{tpu_custom_call.1} parent=5 // pred_region
        %s415 = ssub.s32 %s18, 2
        // Predicated region
        $region53: #{tpu_custom_call.1} parent=51 // pred_check
          %p416 = pneg %p125
        $region54: #{tpu_custom_call.1} parent=51 // pred_check_branch
          %418 = sbr.rel (%p416) target = $region56
        $region55: #{tpu_custom_call.1} parent=51 // pred_region
          %s419 = sand.u32 %s110, 1
          %s420 = scalar_lea.sflag [#allocation4], %s419
          %s421 = sand.u32 %s110, 1
          %s422 = smul.addr %s421, 8
          %s423 = scalar_lea.vmem [#allocation8], %s422
          %424 = dma.done %s420, 128
        $region56: #{tpu_custom_call.1} parent=51 // pred_fallthru
          _
      $region52: #{tpu_custom_call.1} parent=5 // pred_fallthru
        _
    $region6: #{tpu_custom_call.1} parent=1 // loop_footer
      %s22 = sadd.s32 1, %s18
    $region7: #{tpu_custom_call.1} parent=1 // loop_footer_branch
      %17 = sbr.rel target = $region3
    $region8: #{tpu_custom_call.1} parent=1 // loop_exit
      _
    %425 = vsyncpa [#allocation3], 1
    %s426 = scalar_lea.sflag [#allocation3], 1
    %427 = vsyncpa %s426, 1
    %428 = vsyncpa [#allocation6], 1
    %s429 = scalar_lea.sflag [#allocation6], 1
    %430 = vsyncpa %s429, 1
    %431 = vsyncpa [#allocation4], 1
    %s432 = scalar_lea.sflag [#allocation4], 1
    %433 = vsyncpa %s432, 1

</llo_original>
